<compile_context>
chip_gen: v7x
topology: tpu7x:2x2x1
jax: 0.10.0
libtpu: 0.0.40
codegen_flags: <defaults>
</compile_context>

<pallas_src>
import jax
import jax.numpy as jnp
from jax import lax
from jax.experimental import pallas as pl
from jax.experimental.pallas import tpu as pltpu


def _round_up(x, m):
    return ((x + m - 1) // m) * m


def _pick_divisor_tile(n, target, align):
    """Largest divisor of n that is a multiple of `align` and <= target.

    n is assumed to be a multiple of `align`, so `align` itself is always a
    valid fallback (no degenerate full-dimension tiles)."""
    if n <= target:
        return n
    best = align
    t = align
    while t <= target:
        if n % t == 0:
            best = t
        t += align
    return best


def _lm_criterion_kernel(tgt_ref, msk_ref, inp_ref, num_ref, den_ref, acc_ref):
    v = pl.program_id(1)
    n_v = pl.num_programs(1)

    @pl.when(v == 0)
    def _init():
        acc_ref[...] = jnp.zeros_like(acc_ref)

    logp = inp_ref[...]                              # (tR, tV), upstream dtype
    tR, tV = logp.shape
    # local column index of the target within this vocab tile
    tgt_local = tgt_ref[...] - v * tV                # (tR, 1) int32
    lane_ids = lax.broadcasted_iota(jnp.int32, (tR, tV), 1)
    onehot = lane_ids == tgt_local                   # lane-broadcast of sublane values
    # Select + lane-reduce (XLU) into a (tR, 1) f32 accumulator.  At most one
    # nonzero per row per tile, so summing in the input dtype is exact; the
    # cast happens on the (tR, 1) result only.
    sel = jnp.where(onehot, logp, jnp.zeros_like(logp))
    acc_ref[...] += jnp.sum(sel, axis=1, keepdims=True).astype(jnp.float32)

    @pl.when(v == n_v - 1)
    def _finalize():
        gathered = acc_ref[...]                      # (tR, 1) f32
        msk = msk_ref[...]                           # (tR, 1) f32
        num = jnp.sum(-gathered * msk)               # scalar partial for this row tile
        den = jnp.sum(msk)
        num_ref[...] = jnp.full(num_ref.shape, num, dtype=num_ref.dtype)
        den_ref[...] = jnp.full(den_ref.shape, den, dtype=den_ref.dtype)


def language_model_criterion(inputs, target, mask, *, row_tile=512, vocab_tile=4096):
    """inputs: (B, T, V) log-probs (bf16/f32, dtype preserved);
    target: (B, T_full) int; mask: (B, T_full) float, T_full >= T."""
    B, T, V = inputs.shape
    assert target.shape[1] >= T and mask.shape[1] >= T, (
        "target/mask must cover at least input's time dimension")
    # glue: slice target/mask to input's time length (matches `target[:, :input.size(1)]`)
    target = target[:, :T].astype(jnp.int32)
    mask = mask[:, :T].astype(jnp.float32)

    R = B * T
    x = inputs.reshape(R, V)          # keep upstream dtype; contiguous reshape
    tgt = target.reshape(R, 1)        # rows on the sublane axis
    msk = mask.reshape(R, 1)

    # ---- row tiling: pad R, ensure >= 2 row steps when possible (v7x megacore) ----
    R8 = _round_up(R, 8)
    tR = min(_round_up(max(row_tile, 8), 8), R8)
    if R8 > 8 and _round_up(R8, tR) // tR < 2:
        tR = max(8, _round_up(pl.cdiv(R8, 2), 8))
    R_padded = _round_up(R8, tR)
    n_r = R_padded // tR

    # ---- vocab tiling: pad V to a multiple of 128, pick an aligned divisor tile ----
    V128 = _round_up(V, 128)
    vt = max(128, (vocab_tile // 128) * 128)
    tV = _pick_divisor_tile(V128, vt, 128)
    n_v = V128 // tV

    # ---- pad inputs (padded rows: mask=0; padded lanes: never matched by onehot) ----
    if R_padded != R or V128 != V:
        x = jnp.pad(x, ((0, R_padded - R), (0, V128 - V)))
    if R_padded != R:
        tgt = jnp.pad(tgt, ((0, R_padded - R), (0, 0)))
        msk = jnp.pad(msk, ((0, R_padded - R), (0, 0)))

    # ---- VMEM budget: double-buffered input tile + small stuff, clamp to 48 MiB ----
    in_bytes = 2 * tR * tV * jnp.dtype(x.dtype).itemsize
    vmem_limit = int(min(48 * 1024 * 1024, max(32 * 1024 * 1024, in_bytes + (8 << 20))))

    num_out, den_out = pl.pallas_call(
        _lm_criterion_kernel,
        out_shape=(
            jax.ShapeDtypeStruct((n_r, 8, 128), jnp.float32),
            jax.ShapeDtypeStruct((n_r, 8, 128), jnp.float32),
        ),
        grid_spec=pltpu.PrefetchScalarGridSpec(
            num_scalar_prefetch=0,
            grid=(n_r, n_v),                                   # reduction axis (V) last
            in_specs=[
                pl.BlockSpec((tR, 1), lambda r, v: (r, 0)),    # target
                pl.BlockSpec((tR, 1), lambda r, v: (r, 0)),    # mask
                pl.BlockSpec((tR, tV), lambda r, v: (r, v)),   # log-probs (streamed)
            ],
            out_specs=[
                pl.BlockSpec((1, 8, 128), lambda r, v: (r, 0, 0)),  # numerator partials
                pl.BlockSpec((1, 8, 128), lambda r, v: (r, 0, 0)),  # denominator partials
            ],
            scratch_shapes=[pltpu.VMEM((tR, 1), jnp.float32)],      # per-row gather acc
        ),
        compiler_params=pltpu.CompilerParams(
            dimension_semantics=("parallel", "arbitrary"),
            vmem_limit_bytes=vmem_limit,
        ),
    )(tgt, msk, x)

    num = jnp.sum(num_out[:, 0, 0])
    den = jnp.sum(den_out[:, 0, 0])
    return num / den


def _reference(inputs, target, mask):
    T = inputs.shape[1]
    target = target[:, :T]
    mask = mask[:, :T].astype(jnp.float32)
    gathered = jnp.take_along_axis(
        inputs.astype(jnp.float32), target[..., None].astype(jnp.int32), axis=2
    )[..., 0]
    out = -gathered * mask
    return jnp.sum(out) / jnp.sum(mask)


def _make_case(key, B, T, V, T_full):
    k1, k2, k3 = jax.random.split(key, 3)
    logits = jax.random.normal(k1, (B, T, V), dtype=jnp.float32)
    log_probs = jax.nn.log_softmax(logits, axis=-1)
    target = jax.random.randint(k2, (B, T_full), 0, V, dtype=jnp.int32)
    mask = (jax.random.uniform(k3, (B, T_full)) > 0.3).astype(jnp.float32)
    mask = mask.at[:, 0].set(1.0)  # make sure mask isn't all zero
    return log_probs, target, mask


if __name__ == "__main__":
    key = jax.random.PRNGKey(0)
    k_a, k_b = jax.random.split(key, 2)

    # Case 1: aligned shapes; small tiles exercise multi-step row and vocab grids.
    lp, tg, mk = _make_case(k_a, B=2, T=8, V=512, T_full=11)
    loss = language_model_criterion(lp, tg, mk, row_tile=8, vocab_tile=128)
    jax.block_until_ready(loss)
    ref = _reference(lp, tg, mk)
    assert jnp.allclose(loss, ref, atol=1e-5, rtol=1e-5), (loss, ref)

    # Case 2: awkward shapes (R=21, V=200) exercise the row/vocab padding path.
    lp2, tg2, mk2 = _make_case(k_b, B=3, T=7, V=200, T_full=9)
    loss2 = language_model_criterion(lp2, tg2, mk2, row_tile=8, vocab_tile=128)
    jax.block_until_ready(loss2)
    ref2 = _reference(lp2, tg2, mk2)
    assert jnp.allclose(loss2, ref2, atol=1e-5, rtol=1e-5), (loss2, ref2)

    print("KERNEL_OK")
</pallas_src>

<mosaic_0001>
module attributes {stable_mosaic.version = 11 : i64} {
  func.func @_lm_criterion_kernel(%arg0: i32, %arg1: i32, %arg2: memref<8x1xi32, #tpu.memory_space<vmem>>, %arg3: memref<8x1xf32, #tpu.memory_space<vmem>>, %arg4: memref<8x128xf32, #tpu.memory_space<vmem>>, %arg5: memref<1x8x128xf32, #tpu.memory_space<vmem>>, %arg6: memref<1x8x128xf32, #tpu.memory_space<vmem>>, %arg7: memref<8x1xf32, #tpu.memory_space<vmem>>) attributes {dimension_semantics = [#tpu.dimension_semantics<parallel>, #tpu.dimension_semantics<arbitrary>], iteration_bounds = array<i64: 2, 4>, scalar_prefetch = 0 : i64, scratch_operands = 1 : i64, tpu.core_type = #tpu.core_type<tc>, window_params = [{transform_indices = @transform_0, window_bounds = array<i64: 8, 1>}, {transform_indices = @transform_1, window_bounds = array<i64: 8, 1>}, {transform_indices = @transform_2, window_bounds = array<i64: 8, 128>}, {transform_indices = @transform_3, window_bounds = array<i64: 1, 8, 128>}, {transform_indices = @transform_4, window_bounds = array<i64: 1, 8, 128>}]} {
    %c0_i32 = arith.constant 0 : i32
    %0 = arith.cmpi eq, %arg1, %c0_i32 : i32
    %1 = arith.extui %0 : i1 to i32
    %c0_i32_0 = arith.constant 0 : i32
    %2 = arith.cmpi ne, %1, %c0_i32_0 : i32
    scf.if %2 {
      %cst_10 = arith.constant 0.000000e+00 : f32
      %21 = vector.broadcast %cst_10 : f32 to vector<8x1xf32>
      %c0_11 = arith.constant 0 : index
      %c0_12 = arith.constant 0 : index
      %22 = vector.load %arg7[%c0_11, %c0_12] : memref<8x1xf32, #tpu.memory_space<vmem>>, vector<8x1xf32>
      tpu.vector_store %arg7[%c0_11, %c0_12], %21 {strides = array<i32>} : memref<8x1xf32, #tpu.memory_space<vmem>>, vector<8x1xf32>,
    } else {
    }
    %c0 = arith.constant 0 : index
    %c0_1 = arith.constant 0 : index
    %3 = vector.load %arg4[%c0, %c0_1] : memref<8x128xf32, #tpu.memory_space<vmem>>, vector<8x128xf32>
    %c0_2 = arith.constant 0 : index
    %c0_3 = arith.constant 0 : index
    %4 = vector.load %arg2[%c0_2, %c0_3] : memref<8x1xi32, #tpu.memory_space<vmem>>, vector<8x1xi32>
    %c128_i32 = arith.constant 128 : i32
    %5 = arith.muli %arg1, %c128_i32 : i32
    %6 = vector.broadcast %5 : i32 to vector<8x1xi32>
    %7 = arith.subi %4, %6 : vector<8x1xi32>
    %8 = tpu.iota {dimensions = array<i32: 1>} : vector<8x128xi32>
    %9 = vector.broadcast %7 : vector<8x1xi32> to vector<8x128xi32>
    %10 = arith.cmpi eq, %8, %9 : vector<8x128xi32>
    %cst = arith.constant 0.000000e+00 : f32
    %11 = vector.broadcast %cst : f32 to vector<8x128xf32>
    %12 = arith.select %10, %3, %11 : vector<8x128xi1>, vector<8x128xf32>
    %c0_4 = arith.constant 0 : index
    %c0_5 = arith.constant 0 : index
    %13 = vector.load %arg7[%c0_4, %c0_5] : memref<8x1xf32, #tpu.memory_space<vmem>>, vector<8x1xf32>
    %cst_6 = arith.constant dense<0.000000e+00> : vector<8xf32>
    %14 = vector.multi_reduction <add>, %12, %cst_6 [1] : vector<8x128xf32> to vector<8xf32>
    %15 = vector.shape_cast %14 : vector<8xf32> to vector<8x1xf32>
    %16 = arith.addf %13, %15 : vector<8x1xf32>
    %c0_7 = arith.constant 0 : index
    %c0_8 = arith.constant 0 : index
    %17 = vector.load %arg7[%c0_7, %c0_8] : memref<8x1xf32, #tpu.memory_space<vmem>>, vector<8x1xf32>
    tpu.vector_store %arg7[%c0_7, %c0_8], %16 {strides = array<i32>} : memref<8x1xf32, #tpu.memory_space<vmem>>, vector<8x1xf32>,
    %c3_i32 = arith.constant 3 : i32
    %18 = arith.cmpi eq, %arg1, %c3_i32 : i32
    %19 = arith.extui %18 : i1 to i32
    %c0_i32_9 = arith.constant 0 : i32
    %20 = arith.cmpi ne, %19, %c0_i32_9 : i32
    scf.if %20 {
      %c0_10 = arith.constant 0 : index
      %c0_11 = arith.constant 0 : index
      %21 = vector.load %arg7[%c0_10, %c0_11] : memref<8x1xf32, #tpu.memory_space<vmem>>, vector<8x1xf32>
      %c0_12 = arith.constant 0 : index
      %c0_13 = arith.constant 0 : index
      %22 = vector.load %arg3[%c0_12, %c0_13] : memref<8x1xf32, #tpu.memory_space<vmem>>, vector<8x1xf32>
      %cst_14 = arith.constant 0.000000e+00 : f32
      %23 = vector.broadcast %cst_14 : f32 to vector<8x1xf32>
      %24 = arith.subf %23, %21 : vector<8x1xf32>
      %25 = arith.mulf %24, %22 : vector<8x1xf32>
      %26 = vector.shape_cast %25 : vector<8x1xf32> to vector<1x8x1xf32>
      %cst_15 = arith.constant dense<0.000000e+00> : vector<1xf32>
      %27 = vector.multi_reduction <add>, %26, %cst_15 [1, 2] : vector<1x8x1xf32> to vector<1xf32>
      %28 = vector.shape_cast %27 : vector<1xf32> to vector<1x1x1xf32>
      %29 = vector.extract %28[0, 0, 0] : f32 from vector<1x1x1xf32>
      %30 = vector.shape_cast %22 : vector<8x1xf32> to vector<1x8x1xf32>
      %cst_16 = arith.constant dense<0.000000e+00> : vector<1xf32>
      %31 = vector.multi_reduction <add>, %30, %cst_16 [1, 2] : vector<1x8x1xf32> to vector<1xf32>
      %32 = vector.shape_cast %31 : vector<1xf32> to vector<1x1x1xf32>
      %33 = vector.extract %32[0, 0, 0] : f32 from vector<1x1x1xf32>
      %34 = vector.broadcast %29 : f32 to vector<1x8x128xf32>
      %c0_17 = arith.constant 0 : index
      %c0_18 = arith.constant 0 : index
      %c0_19 = arith.constant 0 : index
      %35 = vector.load %arg5[%c0_17, %c0_18, %c0_19] : memref<1x8x128xf32, #tpu.memory_space<vmem>>, vector<1x8x128xf32>
      tpu.vector_store %arg5[%c0_17, %c0_18, %c0_19], %34 {strides = array<i32>} : memref<1x8x128xf32, #tpu.memory_space<vmem>>, vector<1x8x128xf32>,
      %36 = vector.broadcast %33 : f32 to vector<1x8x128xf32>
      %c0_20 = arith.constant 0 : index
      %c0_21 = arith.constant 0 : index
      %c0_22 = arith.constant 0 : index
      %37 = vector.load %arg6[%c0_20, %c0_21, %c0_22] : memref<1x8x128xf32, #tpu.memory_space<vmem>>, vector<1x8x128xf32>
      tpu.vector_store %arg6[%c0_20, %c0_21, %c0_22], %36 {strides = array<i32>} : memref<1x8x128xf32, #tpu.memory_space<vmem>>, vector<1x8x128xf32>,
    } else {
    }
    return
  }
  func.func @transform_0(%arg0: i32, %arg1: i32) -> (i32, i32) {
    %c0_i32 = arith.constant 0 : i32
    %c0_i32_0 = arith.constant 0 : i32
    return %arg0, %c0_i32 : i32, i32
  }
  func.func @transform_1(%arg0: i32, %arg1: i32) -> (i32, i32) {
    %c0_i32 = arith.constant 0 : i32
    %c0_i32_0 = arith.constant 0 : i32
    return %arg0, %c0_i32 : i32, i32
  }
  func.func @transform_2(%arg0: i32, %arg1: i32) -> (i32, i32) {
    %c0_i32 = arith.constant 0 : i32
    return %arg0, %arg1 : i32, i32
  }
  func.func @transform_3(%arg0: i32, %arg1: i32) -> (i32, i32, i32) {
    %c0_i32 = arith.constant 0 : i32
    %c0_i32_0 = arith.constant 0 : i32
    %c0_i32_1 = arith.constant 0 : i32
    return %arg0, %c0_i32, %c0_i32_0 : i32, i32, i32
  }
  func.func @transform_4(%arg0: i32, %arg1: i32) -> (i32, i32, i32) {
    %c0_i32 = arith.constant 0 : i32
    %c0_i32_0 = arith.constant 0 : i32
    %c0_i32_1 = arith.constant 0 : i32
    return %arg0, %c0_i32, %c0_i32_0 : i32, i32, i32
  }
}

</mosaic_0001>

<llo_original>
// kernel: tpu_custom_call.1
$region0: #{tpu_custom_call.1}
  #allocation0 [shape = 'u32[]', space=smem, size = 0x4, offset = 0x4, fixed_abs, tag = 'smem constant byte address 0x4 - core index']
  #allocation1 [shape = 'u32[144,128]{1,0:T(1,128)}', space=vmem, size = 0x12000, scoped, tag = 'internal scratch']
  #allocation2 [shape = 'f32[8,1]{1,0:T(8,128)}', space=vmem, size = 0x1000, scoped, tag = 'scratch operand']
  %s0 = inlined_call_operand.vmem [shape: s32[16,1], index: 0, kind: input, shape index: {}]
  %s1 = inlined_call_operand.vmem [shape: f32[16,1], index: 1, kind: input, shape index: {}]
  %s2 = inlined_call_operand.hbm [shape: f32[16,512], index: 2, kind: input, shape index: {}]
  %s3 = inlined_call_operand.hbm [shape: f32[2,8,128], index: 3, kind: output, shape index: {0}]
  %s4 = inlined_call_operand.hbm [shape: f32[2,8,128], index: 4, kind: output, shape index: {1}]
  %5 = xla_tuple %s3, %s4
  %s6 = sld [smem:[#allocation0]]
  $region65: #{tpu_custom_call.1} parent=0
    _
  %s8 = ssub.s32 1, %s6
  %s9 = scalar_select 0, %s8, %s6
  $region1: #{tpu_custom_call.1} parent=0
    #allocation3 [shape = 'u8[8192]{0}', space=vmem, size = 0x2000, scoped, tag = 'input window, operand 2']
    #allocation4 [shape = 's32[2]{0}', space=sflag, size = 0x8, scoped, tag = 'scoped memory for tpu_custom_call.1']
    #allocation5 [shape = 's32[2]{0}', space=sflag, size = 0x8, scoped, tag = 'scoped memory for tpu_custom_call.1']
    #allocation6 [shape = 'u8[8192]{0}', space=vmem, size = 0x2000, scoped, tag = 'output window, operand 0']
    #allocation7 [shape = 'u8[8192]{0}', space=vmem, size = 0x2000, scoped, tag = 'output window, operand 1']
    #allocation8 [shape = 's32[2]{0}', space=sflag, size = 0x8, scoped, tag = 'scoped memory for tpu_custom_call.1']
    %10 = vsyncpa [#allocation4], 0
    %s11 = scalar_lea.sflag [#allocation4], 1
    %12 = vsyncpa %s11, 0
    %13 = vsyncpa [#allocation5], 0
    %s14 = scalar_lea.sflag [#allocation5], 1
    %15 = vsyncpa %s14, 0
    %16 = vsyncpa [#allocation8], 0
    %s17 = scalar_lea.sflag [#allocation8], 1
    %18 = vsyncpa %s17, 0
    loop: start=0, step=1, limit=10
    $region2: #{tpu_custom_call.1} parent=1 // loop_pre_header
      _
    $region3: #{tpu_custom_call.1} parent=1 // loop_header
      %s20 = sphi 0, %s24
      %p21 = scmp.ge.s32.totalorder %s20, 10
      %s27 = sphi 0, %s39
      %s28 = sphi 0, %s35
      %s29 = sphi 0, %s27
      %s30 = sphi 0, %s28
      %s31 = sphi 0, %s29
      %s32 = sphi 0, %s30
      %s42 = sphi 0, %s44
      %s45 = sphi 0, %s42
      %s46 = sphi 0, %s45
      %s62 = sphi 0, %s46
      %s68 = sphi 0, %s70
      %s71 = sphi 0, %s68
      %s72 = sphi 0, %s71
      %s88 = sphi 0, %s72
      %s96 = sphi 0, %s98
      %s99 = sphi 0, %s96
      %s100 = sphi 0, %s99
      %s116 = sphi 0, %s100
      %s122 = sphi 0, %s124
      %s125 = sphi 0, %s122
      %s126 = sphi 0, %s125
      %s142 = sphi 0, %s126
      %s148 = sphi 0, %s150
      %s151 = sphi 0, %s148
      %s152 = sphi 0, %s151
      %s168 = sphi 0, %s152
    $region4: #{tpu_custom_call.1} parent=1 // loop_header_branch
      %23 = sbr.rel (%p21) target = $region8
    $region5: #{tpu_custom_call.1} parent=1 // loop_body
      %s25 = ssub.s32 %s20, 1
      %s26 = ssub.s32 %s20, 2
      %s33 = sadd.s32 1, %s28
      %p34 = scmp.ge.s32.totalorder %s33, 4
      %s35 = scalar_select %p34, 0, %s33
      %s36 = sadd.s32 1, %s27
      %s37 = scalar_select %p34, %s36, %s27
      %p38 = scmp.ge.s32.totalorder %s37, 2
      %s39 = scalar_select %p38, 0, %s37
      %s40 = ssub.s32 %s27, %s39
      %p41 = scmp.eq.s32.totalorder %s40, 0
      %s43 = sadd.s32 %s42, 1
      %s44 = scalar_select %p41, %s42, %s43
      %p47 = pneg %p41
      %p48 = scmp.eq.s32.totalorder %s20, 7
      %p49 = por %p47, %p48
      %p50 = scmp.ne.s32.totalorder %s42, %s45
      %p51 = scmp.eq.s32.totalorder %s20, 0
      %p52 = por %p50, %p51
      %p53 = scmp.ne.s32.totalorder %s42, %s45
      %p54 = scmp.eq.s32.totalorder %s25, 7
      %p55 = por %p53, %p54
      %p56 = scmp.ne.s32.totalorder %s45, %s46
      %p57 = scmp.eq.s32.totalorder %s25, 0
      %p58 = por %p56, %p57
      %p59 = scmp.ne.s32.totalorder %s45, %s46
      %p60 = scmp.eq.s32.totalorder %s26, 7
      %p61 = por %p59, %p60
      %p63 = scmp.ne.s32.totalorder %s46, %s62
      %p64 = scmp.eq.s32.totalorder %s26, 0
      %p65 = por %p63, %p64
      %s66 = ssub.s32 %s27, %s39
      %p67 = scmp.eq.s32.totalorder %s66, 0
      %s69 = sadd.s32 %s68, 1
      %s70 = scalar_select %p67, %s68, %s69
      %p73 = pneg %p67
      %p74 = scmp.eq.s32.totalorder %s20, 7
      %p75 = por %p73, %p74
      %p76 = scmp.ne.s32.totalorder %s68, %s71
      %p77 = scmp.eq.s32.totalorder %s20, 0
      %p78 = por %p76, %p77
      %p79 = scmp.ne.s32.totalorder %s68, %s71
      %p80 = scmp.eq.s32.totalorder %s25, 7
      %p81 = por %p79, %p80
      %p82 = scmp.ne.s32.totalorder %s71, %s72
      %p83 = scmp.eq.s32.totalorder %s25, 0
      %p84 = por %p82, %p83
      %p85 = scmp.ne.s32.totalorder %s71, %s72
      %p86 = scmp.eq.s32.totalorder %s26, 7
      %p87 = por %p85, %p86
      %p89 = scmp.ne.s32.totalorder %s72, %s88
      %p90 = scmp.eq.s32.totalorder %s26, 0
      %p91 = por %p89, %p90
      %s92 = ssub.s32 %s27, %s39
      %s93 = ssub.s32 %s28, %s35
      %s94 = sor.u32 %s92, %s93
      %p95 = scmp.eq.s32.totalorder %s94, 0
      %s97 = sadd.s32 %s96, 1
      %s98 = scalar_select %p95, %s96, %s97
      %p101 = pneg %p95
      %p102 = scmp.eq.s32.totalorder %s20, 7
      %p103 = por %p101, %p102
      %p104 = scmp.ne.s32.totalorder %s96, %s99
      %p105 = scmp.eq.s32.totalorder %s20, 0
      %p106 = por %p104, %p105
      %p107 = scmp.ne.s32.totalorder %s96, %s99
      %p108 = scmp.eq.s32.totalorder %s25, 7
      %p109 = por %p107, %p108
      %p110 = scmp.ne.s32.totalorder %s99, %s100
      %p111 = scmp.eq.s32.totalorder %s25, 0
      %p112 = por %p110, %p111
      %p113 = scmp.ne.s32.totalorder %s99, %s100
      %p114 = scmp.eq.s32.totalorder %s26, 7
      %p115 = por %p113, %p114
      %p117 = scmp.ne.s32.totalorder %s100, %s116
      %p118 = scmp.eq.s32.totalorder %s26, 0
      %p119 = por %p117, %p118
      %s120 = ssub.s32 %s27, %s39
      %p121 = scmp.eq.s32.totalorder %s120, 0
      %s123 = sadd.s32 %s122, 1
      %s124 = scalar_select %p121, %s122, %s123
      %p127 = pneg %p121
      %p128 = scmp.eq.s32.totalorder %s20, 7
      %p129 = por %p127, %p128
      %p130 = scmp.ne.s32.totalorder %s122, %s125
      %p131 = scmp.eq.s32.totalorder %s20, 0
      %p132 = por %p130, %p131
      %p133 = scmp.ne.s32.totalorder %s122, %s125
      %p134 = scmp.eq.s32.totalorder %s25, 7
      %p135 = por %p133, %p134
      %p136 = scmp.ne.s32.totalorder %s125, %s126
      %p137 = scmp.eq.s32.totalorder %s25, 0
      %p138 = por %p136, %p137
      %p139 = scmp.ne.s32.totalorder %s125, %s126
      %p140 = scmp.eq.s32.totalorder %s26, 7
      %p141 = por %p139, %p140
      %p143 = scmp.ne.s32.totalorder %s126, %s142
      %p144 = scmp.eq.s32.totalorder %s26, 0
      %p145 = por %p143, %p144
      %s146 = ssub.s32 %s27, %s39
      %p147 = scmp.eq.s32.totalorder %s146, 0
      %s149 = sadd.s32 %s148, 1
      %s150 = scalar_select %p147, %s148, %s149
      %p153 = pneg %p147
      %p154 = scmp.eq.s32.totalorder %s20, 7
      %p155 = por %p153, %p154
      %p156 = scmp.ne.s32.totalorder %s148, %s151
      %p157 = scmp.eq.s32.totalorder %s20, 0
      %p158 = por %p156, %p157
      %p159 = scmp.ne.s32.totalorder %s148, %s151
      %p160 = scmp.eq.s32.totalorder %s25, 7
      %p161 = por %p159, %p160
      %p162 = scmp.ne.s32.totalorder %s151, %s152
      %p163 = scmp.eq.s32.totalorder %s25, 0
      %p164 = por %p162, %p163
      %p165 = scmp.ne.s32.totalorder %s151, %s152
      %p166 = scmp.eq.s32.totalorder %s26, 7
      %p167 = por %p165, %p166
      %p169 = scmp.ne.s32.totalorder %s152, %s168
      %p170 = scmp.eq.s32.totalorder %s26, 0
      %p171 = por %p169, %p170
      %p172 = scmp.le.s32.totalorder 1, %s20
      %p173 = scmp.lt.s32.totalorder %s20, 9
      %p174 = pnand %p172, %p173
      %p175 = pneg %p174
      // Predicated region
      $region9: #{tpu_custom_call.1} parent=5 // pred_check
        _
      $region10: #{tpu_custom_call.1} parent=5 // pred_check_branch
        %177 = sbr.rel (%p174) target = $region12
      $region11: #{tpu_custom_call.1} parent=5 // pred_region
        %s178 = ssub.s32 %s20, 1
      $region12: #{tpu_custom_call.1} parent=5 // pred_fallthru
        _
      %p179 = scmp.lt.s32.totalorder %s20, 8
      // Predicated region
      $region13: #{tpu_custom_call.1} parent=5 // pred_check
        %p180 = pneg %p179
      $region14: #{tpu_custom_call.1} parent=5 // pred_check_branch
        %182 = sbr.rel (%p180) target = $region16
      $region15: #{tpu_custom_call.1} parent=5 // pred_region
        // Predicated region
        $region17: #{tpu_custom_call.1} parent=15 // pred_check
          %p183 = pneg %p52
        $region18: #{tpu_custom_call.1} parent=15 // pred_check_branch
          %185 = sbr.rel (%p183) target = $region20
        $region19: #{tpu_custom_call.1} parent=15 // pred_region
          %p186 = scmp.lt.s32.totalorder %s27, 1
          %s187 = scalar_select %p186, %s27, 1
          %s188 = smul.addr %s187, 8
          %s189 = scalar_lea.vmem %s0, %s188
        $region20: #{tpu_custom_call.1} parent=15 // pred_fallthru
          _
        // Predicated region
        $region21: #{tpu_custom_call.1} parent=15 // pred_check
          %p190 = pneg %p78
        $region22: #{tpu_custom_call.1} parent=15 // pred_check_branch
          %192 = sbr.rel (%p190) target = $region24
        $region23: #{tpu_custom_call.1} parent=15 // pred_region
          %p193 = scmp.lt.s32.totalorder %s27, 1
          %s194 = scalar_select %p193, %s27, 1
          %s195 = smul.addr %s194, 8
          %s196 = scalar_lea.vmem %s1, %s195
        $region24: #{tpu_custom_call.1} parent=15 // pred_fallthru
          _
        // Predicated region
        $region25: #{tpu_custom_call.1} parent=15 // pred_check
          %p197 = pneg %p106
        $region26: #{tpu_custom_call.1} parent=15 // pred_check_branch
          %199 = sbr.rel (%p197) target = $region28
        $region27: #{tpu_custom_call.1} parent=15 // pred_region
          %s200 = sand.u32 %s96, 1
          %s201 = scalar_lea.sflag [#allocation4], %s200
          %s202 = sand.u32 %s96, 1
          %s203 = smul.addr %s202, 8
          %s204 = scalar_lea.vmem [#allocation3], %s203
          %s206 = ssub.s32 128, 128
          %207 = vsyncadd %s201, %s206
          %s208 = smul.addr %s27, 4
          %s209 = sadd.s32 %s28, %s208
          %s210 = smul.addr %s209, 128
          %s211 = scalar_lea.hbm %s2, %s210
          %s213 = sshll.u32 %s204, 4
          %s214 = int_to_ptr.vmem [resolvable:$true] %s213
          %216 = dma.hbm_to_vmem [thread:$0]  %s211, 128, %s214, %s201
        $region28: #{tpu_custom_call.1} parent=15 // pred_fallthru
          _
      $region16: #{tpu_custom_call.1} parent=5 // pred_fallthru
        _
      %p217 = scmp.le.s32.totalorder 1, %s20
      %p218 = scmp.lt.s32.totalorder %s20, 9
      %p219 = pnand %p217, %p218
      %p220 = pneg %p219
      // Predicated region
      $region29: #{tpu_custom_call.1} parent=5 // pred_check
        _
      $region30: #{tpu_custom_call.1} parent=5 // pred_check_branch
        %222 = sbr.rel (%p219) target = $region32
      $region31: #{tpu_custom_call.1} parent=5 // pred_region
        %s223 = ssub.s32 %s20, 1
        %s224 = sand.u32 %s99, 1
        %s225 = scalar_lea.sflag [#allocation4], %s224
        %s226 = sand.u32 %s99, 1
        %s227 = smul.addr %s226, 8
        %s228 = scalar_lea.vmem [#allocation3], %s227
        // Predicated region
        $region33: #{tpu_custom_call.1} parent=31 // pred_check
          %p229 = pneg %p112
        $region34: #{tpu_custom_call.1} parent=31 // pred_check_branch
          %231 = sbr.rel (%p229) target = $region36
        $region35: #{tpu_custom_call.1} parent=31 // pred_region
          %232 = dma.done %s225, 128
        $region36: #{tpu_custom_call.1} parent=31 // pred_fallthru
          _
        %p233 = scmp.lt.s32.totalorder %s29, 1
        %s234 = scalar_select %p233, %s29, 1
        %s235 = smul.addr %s234, 8
        %s236 = scalar_lea.vmem %s0, %s235
        %p237 = pneg %p58
        %p238 = pneg %p55
        %p239 = scmp.lt.s32.totalorder %s29, 1
        %s240 = scalar_select %p239, %s29, 1
        %s241 = smul.addr %s240, 8
        %s242 = scalar_lea.vmem %s1, %s241
        %p243 = pneg %p84
        %p244 = pneg %p81
        %s245 = sand.u32 %s99, 1
        %s246 = scalar_lea.sflag [#allocation4], %s245
        %s247 = sand.u32 %s99, 1
        %s248 = smul.addr %s247, 8
        %s249 = scalar_lea.vmem [#allocation3], %s248
        %p250 = pneg %p112
        %p251 = pneg %p109
        %p252 = pneg %p138
        %p253 = pneg %p135
        %s254 = sand.u32 %s125, 1
        %s255 = scalar_lea.sflag [#allocation5], %s254
        %s256 = sand.u32 %s125, 1
        %s257 = smul.addr %s256, 8
        %s258 = scalar_lea.vmem [#allocation6], %s257
        %p259 = pneg %p164
        %p260 = pneg %p161
        %s261 = sand.u32 %s151, 1
        %s262 = scalar_lea.sflag [#allocation8], %s261
        %s263 = sand.u32 %s151, 1
        %s264 = smul.addr %s263, 8
        %s265 = scalar_lea.vmem [#allocation7], %s264
        %p266 = scmp.lt.s32.totalorder %s29, 1
        %s267 = scalar_select %p266, %s29, 1
        %s268 = smul.addr %s267, 8
        %s269 = scalar_lea.vmem %s0, %s268
        %p270 = scmp.lt.s32.totalorder %s29, 1
        %s271 = scalar_select %p270, %s29, 1
        %s272 = smul.addr %s271, 8
        %s273 = scalar_lea.vmem %s1, %s272
        %p274 = scmp.eq.s32.totalorder %s30, 0
        // Predicated region
        $region37: #{tpu_custom_call.1} parent=31 // pred_check
          %p275 = pneg %p274
        $region38: #{tpu_custom_call.1} parent=31 // pred_check_branch
          %277 = sbr.rel (%p275) target = $region40
        $region39: #{tpu_custom_call.1} parent=31 // pred_region
          %vm278 = vcmask 7168
          %279 = vst.msk [vmem:[#allocation2] sm:$0xff] %vm278, 0.0
        $region40: #{tpu_custom_call.1} parent=31 // pred_fallthru
          _
        %v280 = vld [vmem:[%s228] sm:$0xff]
        %v281 = vld [vmem:[%s269] sm:$0xff]
        %s282 = smul.u32 %s30, 128
        %v283 = vstv %s282
        %v284 = vsub.s32 %v281, %v283
        %v285 = vlaneseq
        %v286 = vand.u32 %v285, 127
        %287 = vset.pattern.permute.xlu0 0
        %288 = vperm.xlu0 %287, %v284
        %v289 = vpop.permute.xlu0 %288
        %vm290 = vcmp.eq.s32.totalorder %v286, %v289
        %v291 = vsel %vm290, %v280, 0.0
        %v292 = vld [vmem:[#allocation2] sm:$0xff]
        %293 = vadd.xlane.f32.xlu0 %v291
        %v294 = vpop.xlane.xlu0 %293
        %v295 = vadd.f32 %v292, %v294
        %vm296 = vcmask 7168
        %297 = vst.msk [vmem:[#allocation2] sm:$0xff] %vm296, %v295
        %p298 = scmp.eq.s32.totalorder %s30, 3
        // Predicated region
        $region41: #{tpu_custom_call.1} parent=31 // pred_check
          %p299 = pneg %p298
        $region42: #{tpu_custom_call.1} parent=31 // pred_check_branch
          %301 = sbr.rel (%p299) target = $region44
        $region43: #{tpu_custom_call.1} parent=31 // pred_region
          %v302 = vld [vmem:[#allocation2] sm:$0xff]
          %v303 = vld [vmem:[%s273] sm:$0xff]
          %v304 = vsub.f32 0.0, %v302
          %v305 = vmul.f32 %v304, %v303
          %v306 = vsel %vm296, %v305, 0.0
          %307 = vadd.xlane.f32.xlu0 %v306
          %v308 = vpop.xlane.xlu0 %307
          %v309 = vrot.slane %v308, 4
          %v310 = vadd.f32 %v308, %v309
          %v311 = vrot.slane %v310, 2
          %v312 = vadd.f32 %v310, %v311
          %v313 = vrot.slane %v312, 1
          %v314 = vadd.f32 %v312, %v313
          %s315 = vtos %v314
          %v316 = vsel %vm296, %v303, 0.0
          %317 = vadd.xlane.f32.xlu0 %v316
          %v318 = vpop.xlane.xlu0 %317
          %v319 = vrot.slane %v318, 4
          %v320 = vadd.f32 %v318, %v319
          %v321 = vrot.slane %v320, 2
          %v322 = vadd.f32 %v320, %v321
          %v323 = vrot.slane %v322, 1
          %v324 = vadd.f32 %v322, %v323
          %s325 = vtos %v324
          %v326 = vstv %s315
          %327 = vst [vmem:[%s258] sm:$0xff] %v326
          %v328 = vstv %s325
          %329 = vst [vmem:[%s265] sm:$0xff] %v328
        $region44: #{tpu_custom_call.1} parent=31 // pred_fallthru
          _
        %s330 = sand.u32 %s125, 1
        %s331 = scalar_lea.sflag [#allocation5], %s330
        %s332 = sand.u32 %s125, 1
        %s333 = smul.addr %s332, 8
        %s334 = scalar_lea.vmem [#allocation6], %s333
        %s335 = sand.u32 %s151, 1
        %s336 = scalar_lea.sflag [#allocation8], %s335
        %s337 = sand.u32 %s151, 1
        %s338 = smul.addr %s337, 8
        %s339 = scalar_lea.vmem [#allocation7], %s338
        // Predicated region
        $region45: #{tpu_custom_call.1} parent=31 // pred_check
          %p340 = pneg %p135
        $region46: #{tpu_custom_call.1} parent=31 // pred_check_branch
          %342 = sbr.rel (%p340) target = $region48
        $region47: #{tpu_custom_call.1} parent=31 // pred_region
          %s344 = ssub.s32 128, 128
          %345 = vsyncadd %s331, %s344
          %s346 = smul.addr %s29, 128
          %s347 = scalar_lea.hbm %s3, %s346
          %s349 = sshll.u32 %s334, 4
          %s350 = int_to_ptr.vmem [resolvable:$true] %s349
          %352 = dma.vmem_to_hbm [thread:$0]  %s350, 128, %s347, %s331
        $region48: #{tpu_custom_call.1} parent=31 // pred_fallthru
          _
        // Predicated region
        $region49: #{tpu_custom_call.1} parent=31 // pred_check
          %p353 = pneg %p161
        $region50: #{tpu_custom_call.1} parent=31 // pred_check_branch
          %355 = sbr.rel (%p353) target = $region52
        $region51: #{tpu_custom_call.1} parent=31 // pred_region
          %s357 = ssub.s32 128, 128
          %358 = vsyncadd %s336, %s357
          %s359 = smul.addr %s29, 128
          %s360 = scalar_lea.hbm %s4, %s359
          %s362 = sshll.u32 %s339, 4
          %s363 = int_to_ptr.vmem [resolvable:$true] %s362
          %365 = dma.vmem_to_hbm [thread:$0]  %s363, 128, %s360, %s336
        $region52: #{tpu_custom_call.1} parent=31 // pred_fallthru
          _
      $region32: #{tpu_custom_call.1} parent=5 // pred_fallthru
        _
      %p366 = scmp.le.s32.totalorder 2, %s20
      // Predicated region
      $region53: #{tpu_custom_call.1} parent=5 // pred_check
        %p367 = pneg %p366
      $region54: #{tpu_custom_call.1} parent=5 // pred_check_branch
        %369 = sbr.rel (%p367) target = $region56
      $region55: #{tpu_custom_call.1} parent=5 // pred_region
        %s370 = ssub.s32 %s20, 2
        // Predicated region
        $region57: #{tpu_custom_call.1} parent=55 // pred_check
          %p371 = pneg %p141
        $region58: #{tpu_custom_call.1} parent=55 // pred_check_branch
          %373 = sbr.rel (%p371) target = $region60
        $region59: #{tpu_custom_call.1} parent=55 // pred_region
          %s374 = sand.u32 %s126, 1
          %s375 = scalar_lea.sflag [#allocation5], %s374
          %s376 = sand.u32 %s126, 1
          %s377 = smul.addr %s376, 8
          %s378 = scalar_lea.vmem [#allocation6], %s377
          %379 = dma.done %s375, 128
        $region60: #{tpu_custom_call.1} parent=55 // pred_fallthru
          _
        // Predicated region
        $region61: #{tpu_custom_call.1} parent=55 // pred_check
          %p380 = pneg %p167
        $region62: #{tpu_custom_call.1} parent=55 // pred_check_branch
          %382 = sbr.rel (%p380) target = $region64
        $region63: #{tpu_custom_call.1} parent=55 // pred_region
          %s383 = sand.u32 %s152, 1
          %s384 = scalar_lea.sflag [#allocation8], %s383
          %s385 = sand.u32 %s152, 1
          %s386 = smul.addr %s385, 8
          %s387 = scalar_lea.vmem [#allocation7], %s386
          %388 = dma.done %s384, 128
        $region64: #{tpu_custom_call.1} parent=55 // pred_fallthru
          _
      $region56: #{tpu_custom_call.1} parent=5 // pred_fallthru
        _
    $region6: #{tpu_custom_call.1} parent=1 // loop_footer
      %s24 = sadd.s32 1, %s20
    $region7: #{tpu_custom_call.1} parent=1 // loop_footer_branch
      %19 = sbr.rel target = $region3
    $region8: #{tpu_custom_call.1} parent=1 // loop_exit
      _
    %389 = vsyncpa [#allocation4], 1
    %s390 = scalar_lea.sflag [#allocation4], 1
    %391 = vsyncpa %s390, 1
    %392 = vsyncpa [#allocation5], 1
    %s393 = scalar_lea.sflag [#allocation5], 1
    %394 = vsyncpa %s393, 1
    %395 = vsyncpa [#allocation8], 1
    %s396 = scalar_lea.sflag [#allocation8], 1
    %397 = vsyncpa %s396, 1

</llo_original>
